<compile_context>
chip_gen: v5e
topology: v5e:2x2
jax: 0.10.0
libtpu: 0.0.40
codegen_flags: <defaults>
</compile_context>

<pallas_src>
import numpy as np
import jax
import jax.numpy as jnp
from jax.experimental import pallas as pl
from jax.experimental.pallas import tpu as pltpu

_TWO_PI = float(2.0 * np.pi)


def _round_up(n, m):
    return ((n + m - 1) // m) * m


def _round_down(n, m):
    return (n // m) * m


# ---------------------------------------------------------------------------
# Kernels
# ---------------------------------------------------------------------------

def _gfp_row_kernel(x_ref, w_ref, o_ref):
    # Row layout (2H >= 128): x_ref (TB, 1), w_ref (1, H), o_ref (TB, 2H).
    # NOTE: if H % 128 != 0 the cos half starts mid-vreg (masked store); for
    # the common embed_dim % 256 == 0 case both halves are lane-tile aligned.
    H = w_ref.shape[-1]
    x_proj = (x_ref[...] * w_ref[...]) * jnp.float32(_TWO_PI)   # (TB, H)  VPU
    o_ref[:, :H] = jnp.sin(x_proj).astype(o_ref.dtype)          # EUP, slice store
    o_ref[:, H:] = jnp.cos(x_proj).astype(o_ref.dtype)          # EUP, slice store


def _gfp_col_kernel(x_ref, w_ref, o_ref):
    # Lane-dense (transposed) layout for narrow embed dims (2H < 128):
    # x_ref (1, TB) batch on lanes, w_ref (H, 1), o_ref (2H, TB).
    H = w_ref.shape[0]
    x_proj = (w_ref[...] * x_ref[...]) * jnp.float32(_TWO_PI)   # (H, TB)  VPU
    o_ref[:H, :] = jnp.sin(x_proj).astype(o_ref.dtype)
    o_ref[H:, :] = jnp.cos(x_proj).astype(o_ref.dtype)


# ---------------------------------------------------------------------------
# Wrapper
# ---------------------------------------------------------------------------

def _choose_tile(B, align, block_b, H, itemsize):
    """Batch tile: multiple of `align`, <= B, >=2 grid steps when possible,
    double-buffered output tile capped at ~8 MiB of VMEM."""
    if B <= align:
        return B                                   # single full tile (legal: == full dim)
    vmem_cap = _round_down(max(align, (8 << 20) // max(1, 2 * 2 * H * itemsize)), align)
    tb = min(block_b, _round_up(pl.cdiv(B, 2), align), max(vmem_cap, align))
    return max(tb, align)


def gaussian_fourier_projection(x, w, *, block_b=2048, out_dtype=jnp.float32):
    """x: (B,) float timesteps; w: (embed_dim//2,) fixed random features.

    Returns (B, 2*(embed_dim//2)) = concat(sin(x[:,None]*w*2pi), cos(...), -1),
    matching the torch forward (same f32 rounding order for the argument).
    """
    B = int(x.shape[0])
    H = int(w.shape[-1])
    x = x.astype(jnp.float32)
    w = w.astype(jnp.float32)
    itemsize = jnp.dtype(out_dtype).itemsize

    lane_flip = (2 * H) < 128        # narrow output -> put batch on the lane axis
    align = 128 if lane_flip else 8
    TB = _choose_tile(B, align, block_b, H, itemsize)
    grid = (pl.cdiv(B, TB),)         # ragged last tile handled by Pallas masking

    cost = pl.CostEstimate(
        flops=2 * B * H,                     # x*w and *2pi on the VPU
        transcendentals=2 * B * H,           # sin + cos on the EUP
        bytes_accessed=4 * (B + H) + 2 * B * H * itemsize,
    )
    cparams = pltpu.CompilerParams(dimension_semantics=("parallel",))

    if lane_flip:
        out = pl.pallas_call(
            _gfp_col_kernel,
            out_shape=jax.ShapeDtypeStruct((2 * H, B), out_dtype),
            grid_spec=pltpu.PrefetchScalarGridSpec(
                num_scalar_prefetch=0,
                grid=grid,
                in_specs=[
                    pl.BlockSpec((1, TB), lambda i: (0, i)),   # timesteps on lanes
                    pl.BlockSpec((H, 1), lambda i: (0, 0)),    # W stays VMEM-resident
                ],
                out_specs=pl.BlockSpec((2 * H, TB), lambda i: (0, i)),
            ),
            compiler_params=cparams,
            cost_estimate=cost,
        )(x.reshape(1, B), w.reshape(H, 1))
        # Layout plumbing only; in a fused model feed the (2H, B) slab directly
        # into the consumer matmul instead of transposing here.
        return out.T

    out = pl.pallas_call(
        _gfp_row_kernel,
        out_shape=jax.ShapeDtypeStruct((B, 2 * H), out_dtype),
        grid_spec=pltpu.PrefetchScalarGridSpec(
            num_scalar_prefetch=0,
            grid=grid,
            in_specs=[
                pl.BlockSpec((TB, 1), lambda i: (i, 0)),       # batch tile of timesteps
                pl.BlockSpec((1, H), lambda i: (0, 0)),        # W stays VMEM-resident
            ],
            out_specs=pl.BlockSpec((TB, 2 * H), lambda i: (i, 0)),
        ),
        compiler_params=cparams,
        cost_estimate=cost,
    )(x.reshape(B, 1), w.reshape(1, H))
    return out


class GaussianFourierProjection:
    """Gaussian random features for encoding time steps (Pallas forward)."""

    def __init__(self, embed_dim, scale=30.0, *, key):
        # Matches torch: nn.Parameter(torch.randn(embed_dim // 2) * scale,
        # requires_grad=False).  Output width is 2*(embed_dim//2), exactly as
        # the torch module (only equals embed_dim for even embed_dim).
        self.embed_dim = embed_dim
        self.W = jax.random.normal(key, (embed_dim // 2,), dtype=jnp.float32) * scale

    def __call__(self, x, out_dtype=jnp.float32):
        return gaussian_fourier_projection(x, self.W, out_dtype=out_dtype)


# ---------------------------------------------------------------------------
# Demo / correctness check
# ---------------------------------------------------------------------------

def _reference(x, W):
    # Pure-JAX transcription of the torch forward.
    x_proj = x[:, None] * W[None, :] * 2 * np.pi
    return jnp.concatenate([jnp.sin(x_proj), jnp.cos(x_proj)], axis=-1)


if __name__ == "__main__":
    key = jax.random.PRNGKey(0)
    k_w1, k_x1, k_w2, k_x2 = jax.random.split(key, 4)

    # Case 1: narrow embed dim (2H = 32 < 128) -> lane-dense transposed path.
    proj1 = GaussianFourierProjection(32, 30.0, key=k_w1)
    x1 = jax.random.uniform(k_x1, (8,), dtype=jnp.float32)
    out1 = jax.block_until_ready(proj1(x1))
    assert out1.shape == (8, 32), out1.shape
    np.testing.assert_allclose(np.asarray(out1), np.asarray(_reference(x1, proj1.W)),
                               rtol=1e-5, atol=1e-4)

    # Case 2: wider embed dim (2H = 256), ragged batch -> row path, non-divisible
    # grid (no padding, no post-slice copy), >=2 grid steps for megacore sharding.
    proj2 = GaussianFourierProjection(256, 30.0, key=k_w2)
    x2 = jax.random.uniform(k_x2, (100,), dtype=jnp.float32)
    out2 = jax.block_until_ready(proj2(x2))
    assert out2.shape == (100, 256), out2.shape
    np.testing.assert_allclose(np.asarray(out2), np.asarray(_reference(x2, proj2.W)),
                               rtol=1e-5, atol=1e-4)

    print("KERNEL_OK")
</pallas_src>

<mosaic_0001>
module attributes {stable_mosaic.version = 11 : i64} {
  func.func @_gfp_col_kernel(%arg0: i32, %arg1: memref<1x8xf32, #tpu.memory_space<vmem>>, %arg2: memref<16x1xf32, #tpu.memory_space<vmem>>, %arg3: memref<32x8xf32, #tpu.memory_space<vmem>>) attributes {dimension_semantics = [#tpu.dimension_semantics<parallel>], iteration_bounds = array<i64: 1>, scalar_prefetch = 0 : i64, scratch_operands = 0 : i64, tpu.core_type = #tpu.core_type<tc>, window_params = [{transform_indices = @transform_0, window_bounds = array<i64: 1, 8>}, {pipeline_mode = #tpu.pipeline_mode<synchronous>, transform_indices = @transform_1, window_bounds = array<i64: 16, 1>}, {transform_indices = @transform_2, window_bounds = array<i64: 32, 8>}]} {
    %c0 = arith.constant 0 : index
    %c0_0 = arith.constant 0 : index
    %0 = vector.load %arg2[%c0, %c0_0] : memref<16x1xf32, #tpu.memory_space<vmem>>, vector<16x1xf32>
    %c0_1 = arith.constant 0 : index
    %c0_2 = arith.constant 0 : index
    %1 = vector.load %arg1[%c0_1, %c0_2] : memref<1x8xf32, #tpu.memory_space<vmem>>, vector<1x8xf32>
    %2 = vector.broadcast %0 : vector<16x1xf32> to vector<16x8xf32>
    %3 = vector.broadcast %1 : vector<1x8xf32> to vector<16x8xf32>
    %4 = arith.mulf %2, %3 : vector<16x8xf32>
    %cst = arith.constant 6.28318548 : f32
    %5 = vector.broadcast %cst : f32 to vector<16x8xf32>
    %6 = arith.mulf %4, %5 : vector<16x8xf32>
    %7 = math.sin %6 : vector<16x8xf32>
    %c0_3 = arith.constant 0 : index
    %c0_4 = arith.constant 0 : index
    %8 = vector.load %arg3[%c0_3, %c0_4] : memref<32x8xf32, #tpu.memory_space<vmem>>, vector<16x8xf32>
    tpu.vector_store %arg3[%c0_3, %c0_4], %7 {strides = array<i32>} : memref<32x8xf32, #tpu.memory_space<vmem>>, vector<16x8xf32>,
    %9 = math.cos %6 : vector<16x8xf32>
    %c16 = arith.constant 16 : index
    %c0_5 = arith.constant 0 : index
    %10 = vector.load %arg3[%c16, %c0_5] : memref<32x8xf32, #tpu.memory_space<vmem>>, vector<16x8xf32>
    tpu.vector_store %arg3[%c16, %c0_5], %9 {strides = array<i32>} : memref<32x8xf32, #tpu.memory_space<vmem>>, vector<16x8xf32>,
    return
  }
  func.func @transform_0(%arg0: i32) -> (i32, i32) {
    %c0_i32 = arith.constant 0 : i32
    %c0_i32_0 = arith.constant 0 : i32
    return %c0_i32, %arg0 : i32, i32
  }
  func.func @transform_1(%arg0: i32) -> (i32, i32) {
    %c0_i32 = arith.constant 0 : i32
    %c0_i32_0 = arith.constant 0 : i32
    %c0_i32_1 = arith.constant 0 : i32
    return %c0_i32, %c0_i32_0 : i32, i32
  }
  func.func @transform_2(%arg0: i32) -> (i32, i32) {
    %c0_i32 = arith.constant 0 : i32
    %c0_i32_0 = arith.constant 0 : i32
    return %c0_i32, %arg0 : i32, i32
  }
}

</mosaic_0001>

<llo_original>
// kernel: tpu_custom_call.1
$region0: #{tpu_custom_call.1}
  #allocation0 [shape = 'u32[]', space=smem, size = 0x4, offset = 0x4, fixed_abs, tag = 'smem constant byte address 0x4 - core index']
  #allocation1 [shape = 'u32[72,128]{1,0:T(1,128)}', space=vmem, size = 0x9000, scoped, tag = 'internal scratch']
  %s0 = inlined_call_operand.vmem [shape: f32[1,8], index: 0, kind: input, shape index: {}]
  %s1 = inlined_call_operand.vmem [shape: f32[16,1], index: 1, kind: input, shape index: {}]
  %s2 = inlined_call_operand.vmem [shape: f32[32,8], index: 2, kind: output, shape index: {}]
  %s3 = sld [smem:[#allocation0]]
  $region18: #{tpu_custom_call.1} parent=0
    _
  %s5 = ssub.s32 1, %s3
  %s6 = scalar_select 0, %s5, %s3
  // Predicated region
  $region2: #{tpu_custom_call.1} parent=0 // pred_check
    _
  $region3: #{tpu_custom_call.1} parent=0 // pred_check_branch
    %8 = sbr.rel (0) target = $region5
  $region4: #{tpu_custom_call.1} parent=0 // pred_region
    _
  $region5: #{tpu_custom_call.1} parent=0 // pred_fallthru
    _
  // Predicated region
  $region6: #{tpu_custom_call.1} parent=0 // pred_check
    _
  $region7: #{tpu_custom_call.1} parent=0 // pred_check_branch
    %10 = sbr.rel (0) target = $region9
  $region8: #{tpu_custom_call.1} parent=0 // pred_region
    _
  $region9: #{tpu_custom_call.1} parent=0 // pred_fallthru
    _
  %v11 = vld [vmem:[%s1] sm:$0xff]
  %v12 = vld [vmem:[%s1 + $0x8] sm:$0xff]
  %v13 = vld [vmem:[%s0] sm:$0x1]
  %15 = vset.pattern.permute.xlu0 0
  %16 = vperm.xlu0 %15, %v11
  %v17 = vpop.permute.xlu0 %16
  %20 = vset.pattern.permute.xlu0 0
  %21 = vperm.xlu0 %20, %v12
  %v22 = vpop.permute.xlu0 %21
  %v25 = vperm.slane %v13, 0
  %v27 = vmul.f32 %v17, %v25
  %v28 = vmul.f32 %v22, %v25
  %v29 = vmul.f32 %v27, 6.2831855
  %v30 = vmul.f32 %v28, 6.2831855
  %v31 = vand.u32 2147483647, %v29
  %vm32 = vcmp.le.f32.partialorder %v31, 0.7853982
  %vm33 = vcmp.lt.s32.totalorder %v29, 0
  %v34 = vand.u32 %v29, 2139095040
  %v35 = vshrl.u32 %v34, 23
  %v36 = vsub.s32 %v35, 127
  %v37 = vand.u32 2147483647, %v29
  %v38 = vand.u32 %v37, 8388607
  %v39 = vor.u32 %v38, 8388608
  %v40 = vsub.s32 0, %v39
  %v41 = vadd.s32 %v36, 1
  %vm42 = vcmp.gt.s32.totalorder %v41, 0
  %v43 = vsel %vm42, %v41, 0
  %v44 = vshrl.u32 %v43, 5
  %v45 = vand.u32 %v43, 31
  %v46 = vsub.s32 32, %v45
  %v47 = vshrl.u32 683565275, %v46
  %v48 = vshll.u32 683565275, %v45
  %v49 = vshrl.u32 2475754826, %v46
  %v50 = vor.u32 %v48, %v49
  %v51 = vshll.u32 2475754826, %v45
  %v52 = vshrl.u32 2131351028, %v46
  %v53 = vor.u32 %v51, %v52
  %v54 = vshll.u32 2131351028, %v45
  %v55 = vshrl.u32 2102212464, %v46
  %v56 = vor.u32 %v54, %v55
  %v57 = vshll.u32 2102212464, %v45
  %v58 = vshrl.u32 920167782, %v46
  %v59 = vor.u32 %v57, %v58
  %v60 = vshll.u32 920167782, %v45
  %v61 = vshrl.u32 1326507024, %v46
  %v62 = vor.u32 %v60, %v61
  %vm63 = vcmp.lt.s32.totalorder %v44, 1
  %vm64 = vcmp.lt.s32.totalorder %v44, 2
  %vm65 = vcmp.lt.s32.totalorder %v44, 3
  %vm66 = vcmp.lt.s32.totalorder %v44, 4
  %v67 = vsel %vm63, %v47, %v50
  %v68 = vsel %vm66, %v56, 2102212464
  %v69 = vsel %vm65, %v53, %v68
  %v70 = vsel %vm64, %v67, %v69
  %v71 = vsel %vm63, %v50, %v53
  %v72 = vsel %vm66, %v59, 920167782
  %v73 = vsel %vm65, %v56, %v72
  %v74 = vsel %vm64, %v71, %v73
  %v75 = vsel %vm63, %v53, %v56
  %v76 = vsel %vm66, %v62, 1326507024
  %v77 = vsel %vm65, %v59, %v76
  %v78 = vsel %vm64, %v75, %v77
  %v79 = vshll.u32 %v39, 8
  %v80 = vand.u32 %v79, 65535
  %v81 = vshrl.u32 %v79, 16
  %v82 = vand.u32 %v78, 65535
  %v83 = vshrl.u32 %v78, 16
  %v84 = vmul.u32 %v80, %v82
  %v85 = vmul.u32 %v80, %v83
  %v86 = vmul.u32 %v81, %v82
  %v87 = vmul.u32 %v81, %v83
  %v88 = vshll.u32 %v85, 16
  %v89 = vshrl.u32 %v85, 16
  %v90 = vshll.u32 %v86, 16
  %v91 = vshrl.u32 %v86, 16
  %vm92 = vc.u32 %v84, %v88
  %v93 = vsel %vm92, 1, 0
  %v94 = vadd.s32 %v84, %v88
  %v95 = vadd.s32 %v87, %v93
  %vm96 = vc.u32 %v94, %v90
  %v97 = vsel %vm96, 1, 0
  %v98 = vadd.s32 %v94, %v90
  %v99 = vadd.s32 %v95, %v97
  %v100 = vadd.s32 %v99, %v89
  %v101 = vadd.s32 %v100, %v91
  %v102 = vand.u32 %v79, 65535
  %v103 = vshrl.u32 %v79, 16
  %v104 = vand.u32 %v74, 65535
  %v105 = vshrl.u32 %v74, 16
  %v106 = vmul.u32 %v102, %v104
  %v107 = vmul.u32 %v102, %v105
  %v108 = vmul.u32 %v103, %v104
  %v109 = vmul.u32 %v103, %v105
  %v110 = vshll.u32 %v107, 16
  %v111 = vshrl.u32 %v107, 16
  %v112 = vshll.u32 %v108, 16
  %v113 = vshrl.u32 %v108, 16
  %vm114 = vc.u32 %v106, %v110
  %v115 = vsel %vm114, 1, 0
  %v116 = vadd.s32 %v106, %v110
  %v117 = vadd.s32 %v109, %v115
  %vm118 = vc.u32 %v116, %v112
  %v119 = vsel %vm118, 1, 0
  %v120 = vadd.s32 %v116, %v112
  %v121 = vadd.s32 %v117, %v119
  %v122 = vadd.s32 %v121, %v111
  %v123 = vadd.s32 %v122, %v113
  %v124 = vmul.u32 %v79, %v70
  %v125 = vadd.s32 %v101, %v120
  %vm126 = vc.u32 %v101, %v120
  %v127 = vadd.s32 %v123, 1
  %v128 = vsel %vm126, %v127, %v123
  %v129 = vadd.s32 %v124, %v128
  %v130 = vadd.s32 %v129, 536870912
  %v131 = vshrl.u32 %v130, 30
  %v132 = vshll.u32 %v131, 30
  %v133 = vsub.s32 %v129, %v132
  %vm134 = vcmp.lt.s32.totalorder %v133, 0
  %v135 = vsub.s32 0, %v133
  %v136 = vsel %vm134, %v135, %v133
  %v137 = vclz %v136
  %v138 = vsub.s32 %v137, 2
  %vm139 = vcmp.gt.s32.totalorder 0, %v138
  %v140 = vsel %vm139, 0, %v138
  %v141 = vsub.s32 32, %v140
  %v142 = vshll.u32 %v133, %v140
  %v143 = vshrl.u32 %v125, %v141
  %v144 = vor.u32 %v142, %v143
  %v145 = vsub.s32 4294967266, %v140
  %v146 = vadd.s32 %v145, 127
  %v147 = vshll.u32 %v146, 23
  %v148 = vor.u32 4788187, %v147
  %v149 = vand.u32 2147483647, %v148
  %v151 = vcvt.s32.f32 %v144
  %v152 = vmul.f32 %v151, %v149
  %v153 = vxor.u32 %v152, 2147483648
  %v154 = vsel %vm33, %v153, %v152
  %v155 = vsub.s32 4, %v131
  %v156 = vsel %vm33, %v155, %v131
  %v157 = vsel %vm32, %v29, %v154
  %v158 = vsel %vm32, 0, %v156
  %v159 = vmul.f32 %v157, %v157
  %v160 = vmul.f32 %v159, -0.001358992
  %v161 = vadd.f32 %v160, 0.041655596
  %v162 = vmul.f32 %v159, %v161
  %v163 = vadd.f32 %v162, -0.4999988
  %v164 = vmul.f32 %v159, %v163
  %v165 = vadd.f32 1.0, %v164
  %v166 = vmul.f32 %v157, %v157
  %v167 = vmul.f32 %v166, -0.00019511016
  %v168 = vadd.f32 %v167, 0.008332121
  %v169 = vmul.f32 %v166, %v168
  %v170 = vadd.f32 %v169, -0.16666654
  %v171 = vmul.f32 %v166, %v170
  %v172 = vadd.f32 %v171, 1.0
  %v173 = vmul.f32 %v172, %v157
  %vm174 = vweird.f32 %v29
  %v175 = vadd.s32 %v158, 3
  %v176 = vand.u32 %v175, 3
  %vm177 = vcmp.lt.s32.totalorder %v176, 2
  %vm178 = vcmp.eq.s32.totalorder %v176, 0
  %v179 = vxor.u32 %v173, 2147483648
  %v180 = vsel %vm178, %v165, %v179
  %vm181 = vcmp.eq.s32.totalorder %v176, 2
  %v182 = vxor.u32 %v165, 2147483648
  %v183 = vsel %vm181, %v182, %v173
  %v184 = vsel %vm177, %v180, %v183
  %v185 = vsel %vm174, nan, %v184
  %v186 = vand.u32 2147483647, %v30
  %vm187 = vcmp.le.f32.partialorder %v186, 0.7853982
  %vm188 = vcmp.lt.s32.totalorder %v30, 0
  %v189 = vand.u32 %v30, 2139095040
  %v190 = vshrl.u32 %v189, 23
  %v191 = vsub.s32 %v190, 127
  %v192 = vand.u32 2147483647, %v30
  %v193 = vand.u32 %v192, 8388607
  %v194 = vor.u32 %v193, 8388608
  %v195 = vsub.s32 0, %v194
  %v196 = vadd.s32 %v191, 1
  %vm197 = vcmp.gt.s32.totalorder %v196, 0
  %v198 = vsel %vm197, %v196, 0
  %v199 = vshrl.u32 %v198, 5
  %v200 = vand.u32 %v198, 31
  %v201 = vsub.s32 32, %v200
  %v202 = vshrl.u32 683565275, %v201
  %v203 = vshll.u32 683565275, %v200
  %v204 = vshrl.u32 2475754826, %v201
  %v205 = vor.u32 %v203, %v204
  %v206 = vshll.u32 2475754826, %v200
  %v207 = vshrl.u32 2131351028, %v201
  %v208 = vor.u32 %v206, %v207
  %v209 = vshll.u32 2131351028, %v200
  %v210 = vshrl.u32 2102212464, %v201
  %v211 = vor.u32 %v209, %v210
  %v212 = vshll.u32 2102212464, %v200
  %v213 = vshrl.u32 920167782, %v201
  %v214 = vor.u32 %v212, %v213
  %v215 = vshll.u32 920167782, %v200
  %v216 = vshrl.u32 1326507024, %v201
  %v217 = vor.u32 %v215, %v216
  %vm218 = vcmp.lt.s32.totalorder %v199, 1
  %vm219 = vcmp.lt.s32.totalorder %v199, 2
  %vm220 = vcmp.lt.s32.totalorder %v199, 3
  %vm221 = vcmp.lt.s32.totalorder %v199, 4
  %v222 = vsel %vm218, %v202, %v205
  %v223 = vsel %vm221, %v211, 2102212464
  %v224 = vsel %vm220, %v208, %v223
  %v225 = vsel %vm219, %v222, %v224
  %v226 = vsel %vm218, %v205, %v208
  %v227 = vsel %vm221, %v214, 920167782
  %v228 = vsel %vm220, %v211, %v227
  %v229 = vsel %vm219, %v226, %v228
  %v230 = vsel %vm218, %v208, %v211
  %v231 = vsel %vm221, %v217, 1326507024
  %v232 = vsel %vm220, %v214, %v231
  %v233 = vsel %vm219, %v230, %v232
  %v234 = vshll.u32 %v194, 8
  %v235 = vand.u32 %v234, 65535
  %v236 = vshrl.u32 %v234, 16
  %v237 = vand.u32 %v233, 65535
  %v238 = vshrl.u32 %v233, 16
  %v239 = vmul.u32 %v235, %v237
  %v240 = vmul.u32 %v235, %v238
  %v241 = vmul.u32 %v236, %v237
  %v242 = vmul.u32 %v236, %v238
  %v243 = vshll.u32 %v240, 16
  %v244 = vshrl.u32 %v240, 16
  %v245 = vshll.u32 %v241, 16
  %v246 = vshrl.u32 %v241, 16
  %vm247 = vc.u32 %v239, %v243
  %v248 = vsel %vm247, 1, 0
  %v249 = vadd.s32 %v239, %v243
  %v250 = vadd.s32 %v242, %v248
  %vm251 = vc.u32 %v249, %v245
  %v252 = vsel %vm251, 1, 0
  %v253 = vadd.s32 %v249, %v245
  %v254 = vadd.s32 %v250, %v252
  %v255 = vadd.s32 %v254, %v244
  %v256 = vadd.s32 %v255, %v246
  %v257 = vand.u32 %v234, 65535
  %v258 = vshrl.u32 %v234, 16
  %v259 = vand.u32 %v229, 65535
  %v260 = vshrl.u32 %v229, 16
  %v261 = vmul.u32 %v257, %v259
  %v262 = vmul.u32 %v257, %v260
  %v263 = vmul.u32 %v258, %v259
  %v264 = vmul.u32 %v258, %v260
  %v265 = vshll.u32 %v262, 16
  %v266 = vshrl.u32 %v262, 16
  %v267 = vshll.u32 %v263, 16
  %v268 = vshrl.u32 %v263, 16
  %vm269 = vc.u32 %v261, %v265
  %v270 = vsel %vm269, 1, 0
  %v271 = vadd.s32 %v261, %v265
  %v272 = vadd.s32 %v264, %v270
  %vm273 = vc.u32 %v271, %v267
  %v274 = vsel %vm273, 1, 0
  %v275 = vadd.s32 %v271, %v267
  %v276 = vadd.s32 %v272, %v274
  %v277 = vadd.s32 %v276, %v266
  %v278 = vadd.s32 %v277, %v268
  %v279 = vmul.u32 %v234, %v225
  %v280 = vadd.s32 %v256, %v275
  %vm281 = vc.u32 %v256, %v275
  %v282 = vadd.s32 %v278, 1
  %v283 = vsel %vm281, %v282, %v278
  %v284 = vadd.s32 %v279, %v283
  %v285 = vadd.s32 %v284, 536870912
  %v286 = vshrl.u32 %v285, 30
  %v287 = vshll.u32 %v286, 30
  %v288 = vsub.s32 %v284, %v287
  %vm289 = vcmp.lt.s32.totalorder %v288, 0
  %v290 = vsub.s32 0, %v288
  %v291 = vsel %vm289, %v290, %v288
  %v292 = vclz %v291
  %v293 = vsub.s32 %v292, 2
  %vm294 = vcmp.gt.s32.totalorder 0, %v293
  %v295 = vsel %vm294, 0, %v293
  %v296 = vsub.s32 32, %v295
  %v297 = vshll.u32 %v288, %v295
  %v298 = vshrl.u32 %v280, %v296
  %v299 = vor.u32 %v297, %v298
  %v300 = vsub.s32 4294967266, %v295
  %v301 = vadd.s32 %v300, 127
  %v302 = vshll.u32 %v301, 23
  %v303 = vor.u32 4788187, %v302
  %v304 = vand.u32 2147483647, %v303
  %v306 = vcvt.s32.f32 %v299
  %v307 = vmul.f32 %v306, %v304
  %v308 = vxor.u32 %v307, 2147483648
  %v309 = vsel %vm188, %v308, %v307
  %v310 = vsub.s32 4, %v286
  %v311 = vsel %vm188, %v310, %v286
  %v312 = vsel %vm187, %v30, %v309
  %v313 = vsel %vm187, 0, %v311
  %v314 = vmul.f32 %v312, %v312
  %v315 = vmul.f32 %v314, -0.001358992
  %v316 = vadd.f32 %v315, 0.041655596
  %v317 = vmul.f32 %v314, %v316
  %v318 = vadd.f32 %v317, -0.4999988
  %v319 = vmul.f32 %v314, %v318
  %v320 = vadd.f32 1.0, %v319
  %v321 = vmul.f32 %v312, %v312
  %v322 = vmul.f32 %v321, -0.00019511016
  %v323 = vadd.f32 %v322, 0.008332121
  %v324 = vmul.f32 %v321, %v323
  %v325 = vadd.f32 %v324, -0.16666654
  %v326 = vmul.f32 %v321, %v325
  %v327 = vadd.f32 %v326, 1.0
  %v328 = vmul.f32 %v327, %v312
  %vm329 = vweird.f32 %v30
  %v330 = vadd.s32 %v313, 3
  %v331 = vand.u32 %v330, 3
  %vm332 = vcmp.lt.s32.totalorder %v331, 2
  %vm333 = vcmp.eq.s32.totalorder %v331, 0
  %v334 = vxor.u32 %v328, 2147483648
  %v335 = vsel %vm333, %v320, %v334
  %vm336 = vcmp.eq.s32.totalorder %v331, 2
  %v337 = vxor.u32 %v320, 2147483648
  %v338 = vsel %vm336, %v337, %v328
  %v339 = vsel %vm332, %v335, %v338
  %v340 = vsel %vm329, nan, %v339
  %vm341 = vcmask 64512
  %342 = vst.msk [vmem:[%s2] sm:$0xff] %vm341, %v185
  %343 = vst.msk [vmem:[%s2 + $0x8] sm:$0xff] %vm341, %v340
  %v344 = vand.u32 2147483647, %v29
  %vm345 = vcmp.le.f32.partialorder %v344, 0.7853982
  %vm346 = vcmp.lt.s32.totalorder %v29, 0
  %v347 = vand.u32 %v29, 2139095040
  %v348 = vshrl.u32 %v347, 23
  %v349 = vsub.s32 %v348, 127
  %v350 = vand.u32 2147483647, %v29
  %v351 = vand.u32 %v350, 8388607
  %v352 = vor.u32 %v351, 8388608
  %v353 = vsub.s32 0, %v352
  %v354 = vadd.s32 %v349, 1
  %vm355 = vcmp.gt.s32.totalorder %v354, 0
  %v356 = vsel %vm355, %v354, 0
  %v357 = vshrl.u32 %v356, 5
  %v358 = vand.u32 %v356, 31
  %v359 = vsub.s32 32, %v358
  %v360 = vshrl.u32 683565275, %v359
  %v361 = vshll.u32 683565275, %v358
  %v362 = vshrl.u32 2475754826, %v359
  %v363 = vor.u32 %v361, %v362
  %v364 = vshll.u32 2475754826, %v358
  %v365 = vshrl.u32 2131351028, %v359
  %v366 = vor.u32 %v364, %v365
  %v367 = vshll.u32 2131351028, %v358
  %v368 = vshrl.u32 2102212464, %v359
  %v369 = vor.u32 %v367, %v368
  %v370 = vshll.u32 2102212464, %v358
  %v371 = vshrl.u32 920167782, %v359
  %v372 = vor.u32 %v370, %v371
  %v373 = vshll.u32 920167782, %v358
  %v374 = vshrl.u32 1326507024, %v359
  %v375 = vor.u32 %v373, %v374
  %vm376 = vcmp.lt.s32.totalorder %v357, 1
  %vm377 = vcmp.lt.s32.totalorder %v357, 2
  %vm378 = vcmp.lt.s32.totalorder %v357, 3
  %vm379 = vcmp.lt.s32.totalorder %v357, 4
  %v380 = vsel %vm376, %v360, %v363
  %v381 = vsel %vm379, %v369, 2102212464
  %v382 = vsel %vm378, %v366, %v381
  %v383 = vsel %vm377, %v380, %v382
  %v384 = vsel %vm376, %v363, %v366
  %v385 = vsel %vm379, %v372, 920167782
  %v386 = vsel %vm378, %v369, %v385
  %v387 = vsel %vm377, %v384, %v386
  %v388 = vsel %vm376, %v366, %v369
  %v389 = vsel %vm379, %v375, 1326507024
  %v390 = vsel %vm378, %v372, %v389
  %v391 = vsel %vm377, %v388, %v390
  %v392 = vshll.u32 %v352, 8
  %v393 = vand.u32 %v392, 65535
  %v394 = vshrl.u32 %v392, 16
  %v395 = vand.u32 %v391, 65535
  %v396 = vshrl.u32 %v391, 16
  %v397 = vmul.u32 %v393, %v395
  %v398 = vmul.u32 %v393, %v396
  %v399 = vmul.u32 %v394, %v395
  %v400 = vmul.u32 %v394, %v396
  %v401 = vshll.u32 %v398, 16
  %v402 = vshrl.u32 %v398, 16
  %v403 = vshll.u32 %v399, 16
  %v404 = vshrl.u32 %v399, 16
  %vm405 = vc.u32 %v397, %v401
  %v406 = vsel %vm405, 1, 0
  %v407 = vadd.s32 %v397, %v401
  %v408 = vadd.s32 %v400, %v406
  %vm409 = vc.u32 %v407, %v403
  %v410 = vsel %vm409, 1, 0
  %v411 = vadd.s32 %v407, %v403
  %v412 = vadd.s32 %v408, %v410
  %v413 = vadd.s32 %v412, %v402
  %v414 = vadd.s32 %v413, %v404
  %v415 = vand.u32 %v392, 65535
  %v416 = vshrl.u32 %v392, 16
  %v417 = vand.u32 %v387, 65535
  %v418 = vshrl.u32 %v387, 16
  %v419 = vmul.u32 %v415, %v417
  %v420 = vmul.u32 %v415, %v418
  %v421 = vmul.u32 %v416, %v417
  %v422 = vmul.u32 %v416, %v418
  %v423 = vshll.u32 %v420, 16
  %v424 = vshrl.u32 %v420, 16
  %v425 = vshll.u32 %v421, 16
  %v426 = vshrl.u32 %v421, 16
  %vm427 = vc.u32 %v419, %v423
  %v428 = vsel %vm427, 1, 0
  %v429 = vadd.s32 %v419, %v423
  %v430 = vadd.s32 %v422, %v428
  %vm431 = vc.u32 %v429, %v425
  %v432 = vsel %vm431, 1, 0
  %v433 = vadd.s32 %v429, %v425
  %v434 = vadd.s32 %v430, %v432
  %v435 = vadd.s32 %v434, %v424
  %v436 = vadd.s32 %v435, %v426
  %v437 = vmul.u32 %v392, %v383
  %v438 = vadd.s32 %v414, %v433
  %vm439 = vc.u32 %v414, %v433
  %v440 = vadd.s32 %v436, 1
  %v441 = vsel %vm439, %v440, %v436
  %v442 = vadd.s32 %v437, %v441
  %v443 = vadd.s32 %v442, 536870912
  %v444 = vshrl.u32 %v443, 30
  %v445 = vshll.u32 %v444, 30
  %v446 = vsub.s32 %v442, %v445
  %vm447 = vcmp.lt.s32.totalorder %v446, 0
  %v448 = vsub.s32 0, %v446
  %v449 = vsel %vm447, %v448, %v446
  %v450 = vclz %v449
  %v451 = vsub.s32 %v450, 2
  %vm452 = vcmp.gt.s32.totalorder 0, %v451
  %v453 = vsel %vm452, 0, %v451
  %v454 = vsub.s32 32, %v453
  %v455 = vshll.u32 %v446, %v453
  %v456 = vshrl.u32 %v438, %v454
  %v457 = vor.u32 %v455, %v456
  %v458 = vsub.s32 4294967266, %v453
  %v459 = vadd.s32 %v458, 127
  %v460 = vshll.u32 %v459, 23
  %v461 = vor.u32 4788187, %v460
  %v462 = vand.u32 2147483647, %v461
  %v464 = vcvt.s32.f32 %v457
  %v465 = vmul.f32 %v464, %v462
  %v466 = vxor.u32 %v465, 2147483648
  %v467 = vsel %vm346, %v466, %v465
  %v468 = vsub.s32 4, %v444
  %v469 = vsel %vm346, %v468, %v444
  %v470 = vsel %vm345, %v29, %v467
  %v471 = vsel %vm345, 0, %v469
  %v472 = vmul.f32 %v470, %v470
  %v473 = vmul.f32 %v472, -0.001358992
  %v474 = vadd.f32 %v473, 0.041655596
  %v475 = vmul.f32 %v472, %v474
  %v476 = vadd.f32 %v475, -0.4999988
  %v477 = vmul.f32 %v472, %v476
  %v478 = vadd.f32 1.0, %v477
  %v479 = vmul.f32 %v470, %v470
  %v480 = vmul.f32 %v479, -0.00019511016
  %v481 = vadd.f32 %v480, 0.008332121
  %v482 = vmul.f32 %v479, %v481
  %v483 = vadd.f32 %v482, -0.16666654
  %v484 = vmul.f32 %v479, %v483
  %v485 = vadd.f32 %v484, 1.0
  %v486 = vmul.f32 %v485, %v470
  %vm487 = vweird.f32 %v29
  %v488 = vand.u32 %v471, 3
  %vm489 = vcmp.lt.s32.totalorder %v488, 2
  %vm490 = vcmp.eq.s32.totalorder %v488, 0
  %v491 = vxor.u32 %v486, 2147483648
  %v492 = vsel %vm490, %v478, %v491
  %vm493 = vcmp.eq.s32.totalorder %v488, 2
  %v494 = vxor.u32 %v478, 2147483648
  %v495 = vsel %vm493, %v494, %v486
  %v496 = vsel %vm489, %v492, %v495
  %v497 = vsel %vm487, nan, %v496
  %v498 = vand.u32 2147483647, %v30
  %vm499 = vcmp.le.f32.partialorder %v498, 0.7853982
  %vm500 = vcmp.lt.s32.totalorder %v30, 0
  %v501 = vand.u32 %v30, 2139095040
  %v502 = vshrl.u32 %v501, 23
  %v503 = vsub.s32 %v502, 127
  %v504 = vand.u32 2147483647, %v30
  %v505 = vand.u32 %v504, 8388607
  %v506 = vor.u32 %v505, 8388608
  %v507 = vsub.s32 0, %v506
  %v508 = vadd.s32 %v503, 1
  %vm509 = vcmp.gt.s32.totalorder %v508, 0
  %v510 = vsel %vm509, %v508, 0
  %v511 = vshrl.u32 %v510, 5
  %v512 = vand.u32 %v510, 31
  %v513 = vsub.s32 32, %v512
  %v514 = vshrl.u32 683565275, %v513
  %v515 = vshll.u32 683565275, %v512
  %v516 = vshrl.u32 2475754826, %v513
  %v517 = vor.u32 %v515, %v516
  %v518 = vshll.u32 2475754826, %v512
  %v519 = vshrl.u32 2131351028, %v513
  %v520 = vor.u32 %v518, %v519
  %v521 = vshll.u32 2131351028, %v512
  %v522 = vshrl.u32 2102212464, %v513
  %v523 = vor.u32 %v521, %v522
  %v524 = vshll.u32 2102212464, %v512
  %v525 = vshrl.u32 920167782, %v513
  %v526 = vor.u32 %v524, %v525
  %v527 = vshll.u32 920167782, %v512
  %v528 = vshrl.u32 1326507024, %v513
  %v529 = vor.u32 %v527, %v528
  %vm530 = vcmp.lt.s32.totalorder %v511, 1
  %vm531 = vcmp.lt.s32.totalorder %v511, 2
  %vm532 = vcmp.lt.s32.totalorder %v511, 3
  %vm533 = vcmp.lt.s32.totalorder %v511, 4
  %v534 = vsel %vm530, %v514, %v517
  %v535 = vsel %vm533, %v523, 2102212464
  %v536 = vsel %vm532, %v520, %v535
  %v537 = vsel %vm531, %v534, %v536
  %v538 = vsel %vm530, %v517, %v520
  %v539 = vsel %vm533, %v526, 920167782
  %v540 = vsel %vm532, %v523, %v539
  %v541 = vsel %vm531, %v538, %v540
  %v542 = vsel %vm530, %v520, %v523
  %v543 = vsel %vm533, %v529, 1326507024
  %v544 = vsel %vm532, %v526, %v543
  %v545 = vsel %vm531, %v542, %v544
  %v546 = vshll.u32 %v506, 8
  %v547 = vand.u32 %v546, 65535
  %v548 = vshrl.u32 %v546, 16
  %v549 = vand.u32 %v545, 65535
  %v550 = vshrl.u32 %v545, 16
  %v551 = vmul.u32 %v547, %v549
  %v552 = vmul.u32 %v547, %v550
  %v553 = vmul.u32 %v548, %v549
  %v554 = vmul.u32 %v548, %v550
  %v555 = vshll.u32 %v552, 16
  %v556 = vshrl.u32 %v552, 16
  %v557 = vshll.u32 %v553, 16
  %v558 = vshrl.u32 %v553, 16
  %vm559 = vc.u32 %v551, %v555
  %v560 = vsel %vm559, 1, 0
  %v561 = vadd.s32 %v551, %v555
  %v562 = vadd.s32 %v554, %v560
  %vm563 = vc.u32 %v561, %v557
  %v564 = vsel %vm563, 1, 0
  %v565 = vadd.s32 %v561, %v557
  %v566 = vadd.s32 %v562, %v564
  %v567 = vadd.s32 %v566, %v556
  %v568 = vadd.s32 %v567, %v558
  %v569 = vand.u32 %v546, 65535
  %v570 = vshrl.u32 %v546, 16
  %v571 = vand.u32 %v541, 65535
  %v572 = vshrl.u32 %v541, 16
  %v573 = vmul.u32 %v569, %v571
  %v574 = vmul.u32 %v569, %v572
  %v575 = vmul.u32 %v570, %v571
  %v576 = vmul.u32 %v570, %v572
  %v577 = vshll.u32 %v574, 16
  %v578 = vshrl.u32 %v574, 16
  %v579 = vshll.u32 %v575, 16
  %v580 = vshrl.u32 %v575, 16
  %vm581 = vc.u32 %v573, %v577
  %v582 = vsel %vm581, 1, 0
  %v583 = vadd.s32 %v573, %v577
  %v584 = vadd.s32 %v576, %v582
  %vm585 = vc.u32 %v583, %v579
  %v586 = vsel %vm585, 1, 0
  %v587 = vadd.s32 %v583, %v579
  %v588 = vadd.s32 %v584, %v586
  %v589 = vadd.s32 %v588, %v578
  %v590 = vadd.s32 %v589, %v580
  %v591 = vmul.u32 %v546, %v537
  %v592 = vadd.s32 %v568, %v587
  %vm593 = vc.u32 %v568, %v587
  %v594 = vadd.s32 %v590, 1
  %v595 = vsel %vm593, %v594, %v590
  %v596 = vadd.s32 %v591, %v595
  %v597 = vadd.s32 %v596, 536870912
  %v598 = vshrl.u32 %v597, 30
  %v599 = vshll.u32 %v598, 30
  %v600 = vsub.s32 %v596, %v599
  %vm601 = vcmp.lt.s32.totalorder %v600, 0
  %v602 = vsub.s32 0, %v600
  %v603 = vsel %vm601, %v602, %v600
  %v604 = vclz %v603
  %v605 = vsub.s32 %v604, 2
  %vm606 = vcmp.gt.s32.totalorder 0, %v605
  %v607 = vsel %vm606, 0, %v605
  %v608 = vsub.s32 32, %v607
  %v609 = vshll.u32 %v600, %v607
  %v610 = vshrl.u32 %v592, %v608
  %v611 = vor.u32 %v609, %v610
  %v612 = vsub.s32 4294967266, %v607
  %v613 = vadd.s32 %v612, 127
  %v614 = vshll.u32 %v613, 23
  %v615 = vor.u32 4788187, %v614
  %v616 = vand.u32 2147483647, %v615
  %v618 = vcvt.s32.f32 %v611
  %v619 = vmul.f32 %v618, %v616
  %v620 = vxor.u32 %v619, 2147483648
  %v621 = vsel %vm500, %v620, %v619
  %v622 = vsub.s32 4, %v598
  %v623 = vsel %vm500, %v622, %v598
  %v624 = vsel %vm499, %v30, %v621
  %v625 = vsel %vm499, 0, %v623
  %v626 = vmul.f32 %v624, %v624
  %v627 = vmul.f32 %v626, -0.001358992
  %v628 = vadd.f32 %v627, 0.041655596
  %v629 = vmul.f32 %v626, %v628
  %v630 = vadd.f32 %v629, -0.4999988
  %v631 = vmul.f32 %v626, %v630
  %v632 = vadd.f32 1.0, %v631
  %v633 = vmul.f32 %v624, %v624
  %v634 = vmul.f32 %v633, -0.00019511016
  %v635 = vadd.f32 %v634, 0.008332121
  %v636 = vmul.f32 %v633, %v635
  %v637 = vadd.f32 %v636, -0.16666654
  %v638 = vmul.f32 %v633, %v637
  %v639 = vadd.f32 %v638, 1.0
  %v640 = vmul.f32 %v639, %v624
  %vm641 = vweird.f32 %v30
  %v642 = vand.u32 %v625, 3
  %vm643 = vcmp.lt.s32.totalorder %v642, 2
  %vm644 = vcmp.eq.s32.totalorder %v642, 0
  %v645 = vxor.u32 %v640, 2147483648
  %v646 = vsel %vm644, %v632, %v645
  %vm647 = vcmp.eq.s32.totalorder %v642, 2
  %v648 = vxor.u32 %v632, 2147483648
  %v649 = vsel %vm647, %v648, %v640
  %v650 = vsel %vm643, %v646, %v649
  %v651 = vsel %vm641, nan, %v650
  %652 = vst.msk [vmem:[%s2 + $0x10] sm:$0xff] %vm341, %v497
  %653 = vst.msk [vmem:[%s2 + $0x18] sm:$0xff] %vm341, %v651
  // Predicated region
  $region10: #{tpu_custom_call.1} parent=0 // pred_check
    _
  $region11: #{tpu_custom_call.1} parent=0 // pred_check_branch
    %655 = sbr.rel (0) target = $region13
  $region12: #{tpu_custom_call.1} parent=0 // pred_region
    _
  $region13: #{tpu_custom_call.1} parent=0 // pred_fallthru
    _
  // Predicated region
  $region14: #{tpu_custom_call.1} parent=0 // pred_check
    _
  $region15: #{tpu_custom_call.1} parent=0 // pred_check_branch
    %657 = sbr.rel (0) target = $region17
  $region16: #{tpu_custom_call.1} parent=0 // pred_region
    _
  $region17: #{tpu_custom_call.1} parent=0 // pred_fallthru
    _

</llo_original>
